<compile_context>
chip_gen: v6e
topology: v6e:2x2x1
jax: 0.10.0
libtpu: 0.0.40
codegen_flags: <defaults>
</compile_context>

<pallas_src>
import functools

import jax
import jax.numpy as jnp
from jax.experimental import pallas as pl
from jax.experimental.pallas import tpu as pltpu


GRAY_COEFFS = tuple(float(v) / 256.0 for v in (65.738, 129.057, 25.064))


# ---------------------------------------------------------------------------
# Pallas kernels
# ---------------------------------------------------------------------------

def _gray_lap_kernel(xp_ref, lap_ref, minmax_ref, *, coeffs, h, w):
    """Fused gray conversion + 3x3 Laplacian stencil + running global min/max.

    xp_ref:     (1, C, H+2, W+2)  zero-padded input image (one batch element)
    lap_ref:    (1, H, W)         Laplacian edge map output
    minmax_ref: (2,) SMEM         [global_min, global_max], resident across grid
    """
    # gray = sum_c coeff[c] * x[c]   (pure VPU; the zero halo stays zero)
    g = coeffs[0] * xp_ref[0, 0]
    for c in range(1, len(coeffs)):
        g = g + coeffs[c] * xp_ref[0, c]

    # 3x3 Laplacian [[-1,-1,-1],[-1,8,-1],[-1,-1,-1]], zero padding, computed
    # with static shifted slices of the padded gray image -- no MXU, no im2col.
    lap = 8.0 * g[1:h + 1, 1:w + 1]
    for dy in range(3):
        for dx in range(3):
            if dy == 1 and dx == 1:
                continue
            lap = lap - g[dy:dy + h, dx:dx + w]
    lap_ref[0] = lap

    # Fused global min/max accumulation for the following normalize pass
    # (P3 accumulator pattern on a resident SMEM output).
    lo = jnp.min(lap)
    hi = jnp.max(lap)

    @pl.when(pl.program_id(0) == 0)
    def _():
        minmax_ref[0] = lo
        minmax_ref[1] = hi

    @pl.when(pl.program_id(0) > 0)
    def _():
        minmax_ref[0] = jnp.minimum(minmax_ref[0], lo)
        minmax_ref[1] = jnp.maximum(minmax_ref[1], hi)


def _normalize_kernel(minmax_ref, x_ref, o_ref):
    """o = (x - min) / (max - min); min/max read from SMEM; lane-dense blocks."""
    lo = minmax_ref[0]
    hi = minmax_ref[1]
    # NOTE: no epsilon, to match torch.div(x - x_min, x_max - x_min) exactly.
    o_ref[...] = (x_ref[...] - lo) / (hi - lo)


# ---------------------------------------------------------------------------
# Pallas wrappers
# ---------------------------------------------------------------------------

def _gray_laplacian(xp, use_gray):
    """xp: (N, C, H+2, W+2) zero-padded NCHW input. Returns (lap, minmax)."""
    n, c, hp, wp = xp.shape
    h, w = hp - 2, wp - 2
    coeffs = GRAY_COEFFS if (use_gray and c == 3) else (1.0,) * c
    kern = functools.partial(_gray_lap_kernel, coeffs=coeffs, h=h, w=w)
    lap, minmax = pl.pallas_call(
        kern,
        out_shape=(
            jax.ShapeDtypeStruct((n, h, w), jnp.float32),
            jax.ShapeDtypeStruct((2,), jnp.float32),
        ),
        grid=(n,),
        in_specs=[pl.BlockSpec((1, c, hp, wp), lambda i: (i, 0, 0, 0))],
        out_specs=(
            pl.BlockSpec((1, h, w), lambda i: (i, 0, 0)),
            pl.BlockSpec(memory_space=pltpu.MemorySpace.SMEM),
        ),
        # min/max accumulates across the batch axis -> "arbitrary"
        compiler_params=pltpu.CompilerParams(
            dimension_semantics=("arbitrary",)),
    )(xp)
    return lap, minmax


def _pick_row_tile(rows):
    for t in (2048, 1024, 512, 256, 128, 64, 32, 16, 8):
        if rows % t == 0:
            return t
    return rows


def _normalize(lap, minmax):
    """(x - min)/(max - min) over a lane-dense flattened view of lap."""
    n, h, w = lap.shape
    total = n * h * w
    if total % 128 == 0:
        flat = lap.reshape(total // 128, 128)   # lane-dense: unmasked stores
    else:
        flat = lap.reshape(n * h, w)            # fallback: W on lanes
    rows, lanes = flat.shape
    tr = _pick_row_tile(rows)
    out = pl.pallas_call(
        _normalize_kernel,
        out_shape=jax.ShapeDtypeStruct(flat.shape, flat.dtype),
        grid=(rows // tr,),
        in_specs=[
            pl.BlockSpec(memory_space=pltpu.MemorySpace.SMEM),
            pl.BlockSpec((tr, lanes), lambda i: (i, 0)),
        ],
        out_specs=pl.BlockSpec((tr, lanes), lambda i: (i, 0)),
        compiler_params=pltpu.CompilerParams(
            dimension_semantics=("parallel",)),
    )(minmax, flat)
    return out.reshape(n, h, w)


# ---------------------------------------------------------------------------
# EdgeDetector.forward  (type='LAPLACIAN')
# ---------------------------------------------------------------------------

@jax.jit
def edge_detector(x):
    """x: (N, C, H, W) float32, NCHW (like the PyTorch module).

    Returns (x_norm.repeat(1,3,1,1), x_norm)."""
    n, c, h, w = x.shape
    # Glue: one-time zero pad (stencil halo) so the kernel needs no in-kernel
    # padding and reads the input exactly once from HBM.
    xp = jnp.pad(x, ((0, 0), (0, 0), (1, 1), (1, 1)))
    lap, minmax = _gray_laplacian(xp, use_gray=(c == 3))
    x_norm = _normalize(lap, minmax).reshape(n, 1, h, w)
    # repeat(1,3,1,1) is a pure broadcast -> layout glue.
    return jnp.tile(x_norm, (1, 3, 1, 1)), x_norm


# ---------------------------------------------------------------------------
# Pure-JAX reference (same math, no Pallas) for the correctness check
# ---------------------------------------------------------------------------

def _ref_edge_detector(x):
    n, c, h, w = x.shape
    if c == 3:
        coeff = jnp.array(GRAY_COEFFS, jnp.float32).reshape(1, 3, 1, 1)
        g = jnp.sum(x * coeff, axis=1, keepdims=True)
    else:
        g = x
    gp = jnp.pad(g, ((0, 0), (0, 0), (1, 1), (1, 1)))[:, 0]
    lap = 8.0 * gp[:, 1:h + 1, 1:w + 1]
    for dy in range(3):
        for dx in range(3):
            if dy == 1 and dx == 1:
                continue
            lap = lap - gp[:, dy:dy + h, dx:dx + w]
    lo = jnp.min(lap)
    hi = jnp.max(lap)
    xn = ((lap - lo) / (hi - lo)).reshape(n, 1, h, w)
    return jnp.tile(xn, (1, 3, 1, 1)), xn


# ---------------------------------------------------------------------------

if __name__ == "__main__":
    key = jax.random.PRNGKey(0)
    # PyTorch-style NCHW input: batch=2, 3 channels (forward expects RGB), 16x16
    x = jax.random.uniform(key, (2, 3, 16, 16), jnp.float32)

    edges_rep, edges_gray = edge_detector(x)
    jax.block_until_ready((edges_rep, edges_gray))

    assert edges_rep.shape == (2, 3, 16, 16)
    assert edges_gray.shape == (2, 1, 16, 16)
    assert bool(jnp.all(jnp.isfinite(edges_rep)))
    assert bool(jnp.all(jnp.isfinite(edges_gray)))

    ref_rep, ref_gray = _ref_edge_detector(x)
    assert bool(jnp.allclose(edges_rep, ref_rep, rtol=1e-4, atol=1e-4))
    assert bool(jnp.allclose(edges_gray, ref_gray, rtol=1e-4, atol=1e-4))

    print("KERNEL_OK")
</pallas_src>

<mosaic_0001>
module attributes {stable_mosaic.version = 11 : i64} {
  func.func @_normalize_kernel(%arg0: i32, %arg1: memref<2xf32, #tpu.memory_space<smem>>, %arg2: memref<4x128xf32, #tpu.memory_space<vmem>>, %arg3: memref<4x128xf32, #tpu.memory_space<vmem>>) attributes {dimension_semantics = [#tpu.dimension_semantics<parallel>], iteration_bounds = array<i64: 1>, scalar_prefetch = 0 : i64, scratch_operands = 0 : i64, tpu.core_type = #tpu.core_type<tc>, window_params = [{transform_indices = @transform_0, window_bounds = array<i64: 2>}, {transform_indices = @transform_1, window_bounds = array<i64: 4, 128>}, {transform_indices = @transform_2, window_bounds = array<i64: 4, 128>}]} {
    %c0 = arith.constant 0 : index
    %0 = memref.load %arg1[%c0] : memref<2xf32, #tpu.memory_space<smem>>
    %c1 = arith.constant 1 : index
    %1 = memref.load %arg1[%c1] : memref<2xf32, #tpu.memory_space<smem>>
    %c0_0 = arith.constant 0 : index
    %c0_1 = arith.constant 0 : index
    %2 = vector.load %arg2[%c0_0, %c0_1] : memref<4x128xf32, #tpu.memory_space<vmem>>, vector<4x128xf32>
    %3 = vector.broadcast %0 : f32 to vector<4x128xf32>
    %4 = arith.subf %2, %3 : vector<4x128xf32>
    %5 = arith.subf %1, %0 : f32
    %6 = vector.broadcast %5 : f32 to vector<4x128xf32>
    %7 = arith.divf %4, %6 : vector<4x128xf32>
    %c0_2 = arith.constant 0 : index
    %c0_3 = arith.constant 0 : index
    %8 = vector.load %arg3[%c0_2, %c0_3] : memref<4x128xf32, #tpu.memory_space<vmem>>, vector<4x128xf32>
    tpu.vector_store %arg3[%c0_2, %c0_3], %7 {strides = array<i32>} : memref<4x128xf32, #tpu.memory_space<vmem>>, vector<4x128xf32>,
    return
  }
  func.func @transform_0(%arg0: i32) -> i32 {
    %c0_i32 = arith.constant 0 : i32
    %c0_i32_0 = arith.constant 0 : i32
    return %c0_i32 : i32
  }
  func.func @transform_1(%arg0: i32) -> (i32, i32) {
    %c0_i32 = arith.constant 0 : i32
    %c0_i32_0 = arith.constant 0 : i32
    return %arg0, %c0_i32 : i32, i32
  }
  func.func @transform_2(%arg0: i32) -> (i32, i32) {
    %c0_i32 = arith.constant 0 : i32
    %c0_i32_0 = arith.constant 0 : i32
    return %arg0, %c0_i32 : i32, i32
  }
}

module attributes {stable_mosaic.version = 11 : i64} {
  func.func @_gray_lap_kernel(%arg0: i32, %arg1: memref<1x3x18x18xf32, #tpu.memory_space<vmem>>, %arg2: memref<1x16x16xf32, #tpu.memory_space<vmem>>, %arg3: memref<2xf32, #tpu.memory_space<smem>>) attributes {dimension_semantics = [#tpu.dimension_semantics<arbitrary>], iteration_bounds = array<i64: 2>, scalar_prefetch = 0 : i64, scratch_operands = 0 : i64, tpu.core_type = #tpu.core_type<tc>, window_params = [{transform_indices = @transform_0, window_bounds = array<i64: 1, 3, 18, 18>}, {transform_indices = @transform_1, window_bounds = array<i64: 1, 16, 16>}, {transform_indices = @transform_2, window_bounds = array<i64: 2>}]} {
    %c0 = arith.constant 0 : index
    %c0_0 = arith.constant 0 : index
    %c0_1 = arith.constant 0 : index
    %c0_2 = arith.constant 0 : index
    %0 = vector.load %arg1[%c0, %c0_0, %c0_1, %c0_2] : memref<1x3x18x18xf32, #tpu.memory_space<vmem>>, vector<1x1x18x18xf32>
    %1 = vector.shape_cast %0 : vector<1x1x18x18xf32> to vector<18x18xf32>
    %cst = arith.constant 0.256789058 : f32
    %2 = vector.broadcast %cst : f32 to vector<18x18xf32>
    %3 = arith.mulf %2, %1 : vector<18x18xf32>
    %c0_3 = arith.constant 0 : index
    %c1 = arith.constant 1 : index
    %c0_4 = arith.constant 0 : index
    %c0_5 = arith.constant 0 : index
    %4 = vector.load %arg1[%c0_3, %c1, %c0_4, %c0_5] : memref<1x3x18x18xf32, #tpu.memory_space<vmem>>, vector<1x1x18x18xf32>
    %5 = vector.shape_cast %4 : vector<1x1x18x18xf32> to vector<18x18xf32>
    %cst_6 = arith.constant 0.504128933 : f32
    %6 = vector.broadcast %cst_6 : f32 to vector<18x18xf32>
    %7 = arith.mulf %6, %5 : vector<18x18xf32>
    %8 = arith.addf %3, %7 : vector<18x18xf32>
    %c0_7 = arith.constant 0 : index
    %c2 = arith.constant 2 : index
    %c0_8 = arith.constant 0 : index
    %c0_9 = arith.constant 0 : index
    %9 = vector.load %arg1[%c0_7, %c2, %c0_8, %c0_9] : memref<1x3x18x18xf32, #tpu.memory_space<vmem>>, vector<1x1x18x18xf32>
    %10 = vector.shape_cast %9 : vector<1x1x18x18xf32> to vector<18x18xf32>
    %cst_10 = arith.constant 0.0979062467 : f32
    %11 = vector.broadcast %cst_10 : f32 to vector<18x18xf32>
    %12 = arith.mulf %11, %10 : vector<18x18xf32>
    %13 = arith.addf %8, %12 : vector<18x18xf32>
    %14 = vector.extract_strided_slice %13 {offsets = [1, 1], sizes = [16, 16], strides = [1, 1]} : vector<18x18xf32> to vector<16x16xf32>
    %cst_11 = arith.constant 8.000000e+00 : f32
    %15 = vector.broadcast %cst_11 : f32 to vector<16x16xf32>
    %16 = arith.mulf %15, %14 : vector<16x16xf32>
    %17 = vector.extract_strided_slice %13 {offsets = [0, 0], sizes = [16, 16], strides = [1, 1]} : vector<18x18xf32> to vector<16x16xf32>
    %18 = arith.subf %16, %17 : vector<16x16xf32>
    %19 = vector.extract_strided_slice %13 {offsets = [0, 1], sizes = [16, 16], strides = [1, 1]} : vector<18x18xf32> to vector<16x16xf32>
    %20 = arith.subf %18, %19 : vector<16x16xf32>
    %21 = vector.extract_strided_slice %13 {offsets = [0, 2], sizes = [16, 16], strides = [1, 1]} : vector<18x18xf32> to vector<16x16xf32>
    %22 = arith.subf %20, %21 : vector<16x16xf32>
    %23 = vector.extract_strided_slice %13 {offsets = [1, 0], sizes = [16, 16], strides = [1, 1]} : vector<18x18xf32> to vector<16x16xf32>
    %24 = arith.subf %22, %23 : vector<16x16xf32>
    %25 = vector.extract_strided_slice %13 {offsets = [1, 2], sizes = [16, 16], strides = [1, 1]} : vector<18x18xf32> to vector<16x16xf32>
    %26 = arith.subf %24, %25 : vector<16x16xf32>
    %27 = vector.extract_strided_slice %13 {offsets = [2, 0], sizes = [16, 16], strides = [1, 1]} : vector<18x18xf32> to vector<16x16xf32>
    %28 = arith.subf %26, %27 : vector<16x16xf32>
    %29 = vector.extract_strided_slice %13 {offsets = [2, 1], sizes = [16, 16], strides = [1, 1]} : vector<18x18xf32> to vector<16x16xf32>
    %30 = arith.subf %28, %29 : vector<16x16xf32>
    %31 = vector.extract_strided_slice %13 {offsets = [2, 2], sizes = [16, 16], strides = [1, 1]} : vector<18x18xf32> to vector<16x16xf32>
    %32 = arith.subf %30, %31 : vector<16x16xf32>
    %c0_12 = arith.constant 0 : index
    %c0_13 = arith.constant 0 : index
    %c0_14 = arith.constant 0 : index
    %33 = vector.load %arg2[%c0_12, %c0_13, %c0_14] : memref<1x16x16xf32, #tpu.memory_space<vmem>>, vector<1x16x16xf32>
    %34 = vector.shape_cast %33 : vector<1x16x16xf32> to vector<16x16xf32>
    %35 = vector.shape_cast %32 : vector<16x16xf32> to vector<1x16x16xf32>
    tpu.vector_store %arg2[%c0_12, %c0_13, %c0_14], %35 {strides = array<i32>} : memref<1x16x16xf32, #tpu.memory_space<vmem>>, vector<1x16x16xf32>,
    %36 = vector.shape_cast %32 : vector<16x16xf32> to vector<1x16x16xf32>
    %cst_15 = arith.constant dense<0x7F800000> : vector<1xf32>
    %37 = vector.multi_reduction <minimumf>, %36, %cst_15 [1, 2] : vector<1x16x16xf32> to vector<1xf32>
    %38 = vector.shape_cast %37 : vector<1xf32> to vector<1x1x1xf32>
    %39 = vector.extract %38[0, 0, 0] : f32 from vector<1x1x1xf32>
    %40 = vector.shape_cast %32 : vector<16x16xf32> to vector<1x16x16xf32>
    %cst_16 = arith.constant dense<0xFF800000> : vector<1xf32>
    %41 = vector.multi_reduction <maximumf>, %40, %cst_16 [1, 2] : vector<1x16x16xf32> to vector<1xf32>
    %42 = vector.shape_cast %41 : vector<1xf32> to vector<1x1x1xf32>
    %43 = vector.extract %42[0, 0, 0] : f32 from vector<1x1x1xf32>
    %c0_i32 = arith.constant 0 : i32
    %44 = arith.cmpi eq, %arg0, %c0_i32 : i32
    %45 = arith.extui %44 : i1 to i32
    %c0_i32_17 = arith.constant 0 : i32
    %46 = arith.cmpi ne, %45, %c0_i32_17 : i32
    scf.if %46 {
      %c0_20 = arith.constant 0 : index
      %50 = memref.load %arg3[%c0_20] : memref<2xf32, #tpu.memory_space<smem>>
      memref.store %39, %arg3[%c0_20] : memref<2xf32, #tpu.memory_space<smem>>
      %c1_21 = arith.constant 1 : index
      %51 = memref.load %arg3[%c1_21] : memref<2xf32, #tpu.memory_space<smem>>
      memref.store %43, %arg3[%c1_21] : memref<2xf32, #tpu.memory_space<smem>>
    } else {
    }
    %c0_i32_18 = arith.constant 0 : i32
    %47 = arith.cmpi sgt, %arg0, %c0_i32_18 : i32
    %48 = arith.extui %47 : i1 to i32
    %c0_i32_19 = arith.constant 0 : i32
    %49 = arith.cmpi ne, %48, %c0_i32_19 : i32
    scf.if %49 {
      %c0_20 = arith.constant 0 : index
      %50 = memref.load %arg3[%c0_20] : memref<2xf32, #tpu.memory_space<smem>>
      %51 = arith.minimumf %50, %39 : f32
      %c0_21 = arith.constant 0 : index
      %52 = memref.load %arg3[%c0_21] : memref<2xf32, #tpu.memory_space<smem>>
      memref.store %51, %arg3[%c0_21] : memref<2xf32, #tpu.memory_space<smem>>
      %c1_22 = arith.constant 1 : index
      %53 = memref.load %arg3[%c1_22] : memref<2xf32, #tpu.memory_space<smem>>
      %54 = arith.maximumf %53, %43 : f32
      %c1_23 = arith.constant 1 : index
      %55 = memref.load %arg3[%c1_23] : memref<2xf32, #tpu.memory_space<smem>>
      memref.store %54, %arg3[%c1_23] : memref<2xf32, #tpu.memory_space<smem>>
    } else {
    }
    return
  }
  func.func @transform_0(%arg0: i32) -> (i32, i32, i32, i32) {
    %c0_i32 = arith.constant 0 : i32
    %c0_i32_0 = arith.constant 0 : i32
    %c0_i32_1 = arith.constant 0 : i32
    %c0_i32_2 = arith.constant 0 : i32
    return %arg0, %c0_i32, %c0_i32_0, %c0_i32_1 : i32, i32, i32, i32
  }
  func.func @transform_1(%arg0: i32) -> (i32, i32, i32) {
    %c0_i32 = arith.constant 0 : i32
    %c0_i32_0 = arith.constant 0 : i32
    %c0_i32_1 = arith.constant 0 : i32
    return %arg0, %c0_i32, %c0_i32_0 : i32, i32, i32
  }
  func.func @transform_2(%arg0: i32) -> i32 {
    %c0_i32 = arith.constant 0 : i32
    %c0_i32_0 = arith.constant 0 : i32
    return %c0_i32 : i32
  }
}

</mosaic_0001>

<llo_original>
// kernel: edge_detector.3
$region0: #{edge_detector.3}
  #allocation0 [shape = 'u32[]', space=smem, size = 0x4, offset = 0x4, fixed_abs, tag = 'smem constant byte address 0x4 - core index']
  #allocation1 [shape = 'u32[144,128]{1,0:T(1,128)}', space=vmem, size = 0x12000, scoped, tag = 'internal scratch']
  %s0 = inlined_call_operand.vmem [shape: f32[2], index: 0, kind: input, shape index: {}]
  %s1 = inlined_call_operand.vmem [shape: f32[4,128], index: 1, kind: input, shape index: {}]
  %s2 = inlined_call_operand.vmem [shape: f32[4,128], index: 2, kind: output, shape index: {}]
  %s3 = sld [smem:[#allocation0]]
  $region22: #{edge_detector.3} parent=0
    _
  %s5 = ssub.s32 1, %s3
  %s6 = scalar_select 0, %s5, %s3
  $region1: #{edge_detector.3} parent=0
    #allocation2 [shape = 'u8[512]{0}', space=smem, size = 0x200, scoped, tag = 'input window, operand 0, single buffered']
    #allocation3 [shape = 's32[1]{0}', space=sflag, size = 0x4, scoped, tag = 'scoped memory for edge_detector.3']
    %7 = vsyncpa [#allocation3], 0
    // Predicated region
    $region2: #{edge_detector.3} parent=1 // pred_check
      _
    $region3: #{edge_detector.3} parent=1 // pred_check_branch
      %9 = sbr.rel (0) target = $region5
    $region4: #{edge_detector.3} parent=1 // pred_region
      %s11 = ssub.s32 16, 16
      %12 = vsyncadd [#allocation3], %s11
      %s14 = sshll.u32 %s0, 4
      %s15 = int_to_ptr.vmem [resolvable:$true] %s14
      %17 = dma.vmem_to_smem %s15, 16, [#allocation2], [#allocation3]
    $region5: #{edge_detector.3} parent=1 // pred_fallthru
      _
    // Predicated region
    $region6: #{edge_detector.3} parent=1 // pred_check
      _
    $region7: #{edge_detector.3} parent=1 // pred_check_branch
      %19 = sbr.rel (0) target = $region9
    $region8: #{edge_detector.3} parent=1 // pred_region
      _
    $region9: #{edge_detector.3} parent=1 // pred_fallthru
      _
    // Predicated region
    $region10: #{edge_detector.3} parent=1 // pred_check
      _
    $region11: #{edge_detector.3} parent=1 // pred_check_branch
      %21 = sbr.rel (0) target = $region13
    $region12: #{edge_detector.3} parent=1 // pred_region
      %22 = dma.done [#allocation3], 16
    $region13: #{edge_detector.3} parent=1 // pred_fallthru
      _
    %23 = sfence
    %s24 = sld [smem:[#allocation2]]
    %s25 = sld [smem:[#allocation2 + $0x1]]
    %v26 = vld [vmem:[%s1] sm:$0xf]
    %v27 = vstv %s24
    %v28 = vsub.f32 %v26, %v27
    %s29 = ssub.f32 %s25, %s24
    %v30 = vstv %s29
    %v31 = vrcp.pop %v30
    %v32 = vmul.f32 %v28, %v31
    %33 = vst [vmem:[%s2] sm:$0xf] %v32
    // Predicated region
    $region14: #{edge_detector.3} parent=1 // pred_check
      _
    $region15: #{edge_detector.3} parent=1 // pred_check_branch
      %35 = sbr.rel (0) target = $region17
    $region16: #{edge_detector.3} parent=1 // pred_region
      _
    $region17: #{edge_detector.3} parent=1 // pred_fallthru
      _
    // Predicated region
    $region18: #{edge_detector.3} parent=1 // pred_check
      _
    $region19: #{edge_detector.3} parent=1 // pred_check_branch
      %37 = sbr.rel (0) target = $region21
    $region20: #{edge_detector.3} parent=1 // pred_region
      _
    $region21: #{edge_detector.3} parent=1 // pred_fallthru
      _
    %38 = vsyncpa [#allocation3], 1

// kernel: edge_detector.2
$region0: #{edge_detector.2}
  #allocation0 [shape = 'u32[]', space=smem, size = 0x4, offset = 0x4, fixed_abs, tag = 'smem constant byte address 0x4 - core index']
  #allocation1 [shape = 'u32[144,128]{1,0:T(1,128)}', space=vmem, size = 0x12000, scoped, tag = 'internal scratch']
  %s0 = inlined_call_operand.vmem [shape: f32[2,3,18,18], index: 0, kind: input, shape index: {}]
  %s1 = inlined_call_operand.vmem [shape: f32[2,16,16], index: 1, kind: output, shape index: {0}]
  %s2 = inlined_call_operand.vmem [shape: f32[2], index: 2, kind: output, shape index: {1}]
  %3 = xla_tuple %s1, %s2
  %s4 = sld [smem:[#allocation0]]
  $region53: #{edge_detector.2} parent=0
    _
  %s6 = ssub.s32 1, %s4
  %s7 = scalar_select 0, %s6, %s4
  $region1: #{edge_detector.2} parent=0
    #allocation2 [shape = 'u8[512]{0}', space=smem, size = 0x200, scoped, tag = 'output window, operand 1, single buffered']
    #allocation3 [shape = 's32[2]{0}', space=sflag, size = 0x8, scoped, tag = 'scoped memory for edge_detector.2']
    %8 = vsyncpa [#allocation3], 0
    loop: start=0, step=1, limit=4
    $region2: #{edge_detector.2} parent=1 // loop_pre_header
      _
    $region3: #{edge_detector.2} parent=1 // loop_header
      %s10 = sphi 0, %s14
      %p11 = scmp.ge.s32.totalorder %s10, 4
      %s20 = sphi 0, %s22
      %s23 = sphi 0, %s20
      %s24 = sphi 0, %s23
      %s40 = sphi 0, %s24
      %s46 = sphi 0, %s48
      %s49 = sphi 0, %s46
      %s50 = sphi 0, %s49
      %s66 = sphi 0, %s50
      %s70 = sphi 0, %s70
      %s72 = sphi 0, %s70
      %s73 = sphi 0, %s72
      %s87 = sphi 0, %s73
    $region4: #{edge_detector.2} parent=1 // loop_header_branch
      %13 = sbr.rel (%p11) target = $region8
    $region5: #{edge_detector.2} parent=1 // loop_body
      %s15 = ssub.s32 %s10, 1
      %s16 = ssub.s32 %s10, 2
      %s17 = sadd.s32 %s10, 1
      %s18 = ssub.s32 %s10, %s17
      %p19 = scmp.eq.s32.totalorder %s18, 0
      %s21 = sadd.s32 %s20, 1
      %s22 = scalar_select %p19, %s20, %s21
      %p25 = pneg %p19
      %p26 = scmp.eq.s32.totalorder %s10, 1
      %p27 = por %p25, %p26
      %p28 = scmp.ne.s32.totalorder %s20, %s23
      %p29 = scmp.eq.s32.totalorder %s10, 0
      %p30 = por %p28, %p29
      %p31 = scmp.ne.s32.totalorder %s20, %s23
      %p32 = scmp.eq.s32.totalorder %s15, 1
      %p33 = por %p31, %p32
      %p34 = scmp.ne.s32.totalorder %s23, %s24
      %p35 = scmp.eq.s32.totalorder %s15, 0
      %p36 = por %p34, %p35
      %p37 = scmp.ne.s32.totalorder %s23, %s24
      %p38 = scmp.eq.s32.totalorder %s16, 1
      %p39 = por %p37, %p38
      %p41 = scmp.ne.s32.totalorder %s24, %s40
      %p42 = scmp.eq.s32.totalorder %s16, 0
      %p43 = por %p41, %p42
      %s44 = ssub.s32 %s10, %s17
      %p45 = scmp.eq.s32.totalorder %s44, 0
      %s47 = sadd.s32 %s46, 1
      %s48 = scalar_select %p45, %s46, %s47
      %p51 = pneg %p45
      %p52 = scmp.eq.s32.totalorder %s10, 1
      %p53 = por %p51, %p52
      %p54 = scmp.ne.s32.totalorder %s46, %s49
      %p55 = scmp.eq.s32.totalorder %s10, 0
      %p56 = por %p54, %p55
      %p57 = scmp.ne.s32.totalorder %s46, %s49
      %p58 = scmp.eq.s32.totalorder %s15, 1
      %p59 = por %p57, %p58
      %p60 = scmp.ne.s32.totalorder %s49, %s50
      %p61 = scmp.eq.s32.totalorder %s15, 0
      %p62 = por %p60, %p61
      %p63 = scmp.ne.s32.totalorder %s49, %s50
      %p64 = scmp.eq.s32.totalorder %s16, 1
      %p65 = por %p63, %p64
      %p67 = scmp.ne.s32.totalorder %s50, %s66
      %p68 = scmp.eq.s32.totalorder %s16, 0
      %p69 = por %p67, %p68
      %s71 = sadd.s32 %s70, 1
      %p74 = scmp.eq.s32.totalorder %s10, 1
      %p75 = scmp.ne.s32.totalorder %s70, %s72
      %p76 = scmp.eq.s32.totalorder %s10, 0
      %p77 = por %p75, %p76
      %p78 = scmp.ne.s32.totalorder %s70, %s72
      %p79 = scmp.eq.s32.totalorder %s15, 1
      %p80 = por %p78, %p79
      %p81 = scmp.ne.s32.totalorder %s72, %s73
      %p82 = scmp.eq.s32.totalorder %s15, 0
      %p83 = por %p81, %p82
      %p84 = scmp.ne.s32.totalorder %s72, %s73
      %p85 = scmp.eq.s32.totalorder %s16, 1
      %p86 = por %p84, %p85
      %p88 = scmp.ne.s32.totalorder %s73, %s87
      %p89 = scmp.eq.s32.totalorder %s16, 0
      %p90 = por %p88, %p89
      %p91 = scmp.le.s32.totalorder 1, %s10
      %p92 = scmp.lt.s32.totalorder %s10, 3
      %p93 = pnand %p91, %p92
      %p94 = pneg %p93
      // Predicated region
      $region9: #{edge_detector.2} parent=5 // pred_check
        _
      $region10: #{edge_detector.2} parent=5 // pred_check_branch
        %96 = sbr.rel (%p93) target = $region12
      $region11: #{edge_detector.2} parent=5 // pred_region
        %s97 = ssub.s32 %s10, 1
      $region12: #{edge_detector.2} parent=5 // pred_fallthru
        _
      %p98 = scmp.lt.s32.totalorder %s10, 2
      // Predicated region
      $region13: #{edge_detector.2} parent=5 // pred_check
        %p99 = pneg %p98
      $region14: #{edge_detector.2} parent=5 // pred_check_branch
        %101 = sbr.rel (%p99) target = $region16
      $region15: #{edge_detector.2} parent=5 // pred_region
        // Predicated region
        $region17: #{edge_detector.2} parent=15 // pred_check
          %p102 = pneg %p30
        $region18: #{edge_detector.2} parent=15 // pred_check_branch
          %104 = sbr.rel (%p102) target = $region20
        $region19: #{edge_detector.2} parent=15 // pred_region
          %p105 = scmp.lt.s32.totalorder %s10, 1
          %s106 = scalar_select %p105, %s10, 1
          %s107 = smul.addr %s106, 9
          %s108 = smul.addr %s107, 8
          %s109 = scalar_lea.vmem %s0, %s108
        $region20: #{edge_detector.2} parent=15 // pred_fallthru
          _
      $region16: #{edge_detector.2} parent=5 // pred_fallthru
        _
      %p110 = scmp.le.s32.totalorder 1, %s10
      %p111 = scmp.lt.s32.totalorder %s10, 3
      %p112 = pnand %p110, %p111
      %p113 = pneg %p112
      // Predicated region
      $region21: #{edge_detector.2} parent=5 // pred_check
        _
      $region22: #{edge_detector.2} parent=5 // pred_check_branch
        %115 = sbr.rel (%p112) target = $region24
      $region23: #{edge_detector.2} parent=5 // pred_region
        %s116 = ssub.s32 %s10, 1
        %p117 = scmp.lt.s32.totalorder %s15, 1
        %s118 = scalar_select %p117, %s15, 1
        %s119 = smul.addr %s118, 9
        %s120 = smul.addr %s119, 8
        %s121 = scalar_lea.vmem %s0, %s120
        %p122 = pneg %p36
        %p123 = pneg %p33
        %p124 = pneg %p62
        %p125 = pneg %p59
        %p126 = scmp.lt.s32.totalorder %s15, 1
        %s127 = scalar_select %p126, %s15, 1
        %s128 = smul.addr %s127, 2
        %s129 = smul.addr %s128, 8
        %s130 = scalar_lea.vmem %s1, %s129
        %p131 = pneg %p83
        %p132 = pneg %p80
        %p133 = scmp.lt.s32.totalorder %s15, 1
        %s134 = scalar_select %p133, %s15, 1
        %s135 = smul.addr %s134, 9
        %s136 = smul.addr %s135, 8
        %s137 = scalar_lea.vmem %s0, %s136
        %p138 = scmp.lt.s32.totalorder %s15, 1
        %s139 = scalar_select %p138, %s15, 1
        %s140 = smul.addr %s139, 2
        %s141 = smul.addr %s140, 8
        %s142 = scalar_lea.vmem %s1, %s141
        %v143 = vld [vmem:[%s137] sm:$0xff]
        %v144 = vld [vmem:[%s137 + $0x8] sm:$0xff]
        %v145 = vld [vmem:[%s137 + $0x10] sm:$0x3]
        %v146 = vmul.f32 %v143, 0.25678906
        %v147 = vmul.f32 %v144, 0.25678906
        %v148 = vmul.f32 %v145, 0.25678906
        %s149 = scalar_lea.vmem %s137, 24
        %v150 = vld [vmem:[%s149] sm:$0xff]
        %v151 = vld [vmem:[%s149 + $0x8] sm:$0xff]
        %v152 = vld [vmem:[%s149 + $0x10] sm:$0x3]
        %v153 = vmul.f32 %v150, 0.50412893
        %v154 = vmul.f32 %v151, 0.50412893
        %v155 = vmul.f32 %v152, 0.50412893
        %v156 = vadd.f32 %v146, %v153
        %v157 = vadd.f32 %v147, %v154
        %v158 = vadd.f32 %v148, %v155
        %s159 = scalar_lea.vmem %s137, 48
        %v160 = vld [vmem:[%s159] sm:$0xff]
        %v161 = vld [vmem:[%s159 + $0x8] sm:$0xff]
        %v162 = vld [vmem:[%s159 + $0x10] sm:$0x3]
        %v163 = vmul.f32 %v160, 0.09790625
        %v164 = vmul.f32 %v161, 0.09790625
        %v165 = vmul.f32 %v162, 0.09790625
        %v166 = vadd.f32 %v156, %v163
        %v167 = vadd.f32 %v157, %v164
        %v168 = vadd.f32 %v158, %v165
        %v169 = vmul.f32 %v166, 8.0
        %v170 = vmul.f32 %v167, 8.0
        %v171 = vmul.f32 %v168, 8.0
        %vm174 = vcmask 1040384
        %v175 = vrot.slane %v166, 7
        %v176 = vrot.slane %v167, 7
        %v177 = vsel %vm174, %v175, %v176
        %178 = vrot.lane.b32.xlu0 %v175, 1
        %v179 = vpop.permute.xlu0 %178
        %180 = vrot.lane.b32.xlu0 %v177, 1
        %v181 = vpop.permute.xlu0 %180
        %182 = vrot.lane.b32.xlu0 %v176, 1
        %v183 = vpop.permute.xlu0 %182
        %v187 = vsub.f32 %v169, %v179
        %v188 = vsub.f32 %v170, %v181
        %v189 = vsub.f32 %v171, %v183
        %v193 = vsub.f32 %v187, %v175
        %v194 = vsub.f32 %v188, %v177
        %v195 = vsub.f32 %v189, %v176
        %196 = vrot.lane.b32.xlu0 %v175, 127
        %v197 = vpop.permute.xlu0 %196
        %198 = vrot.lane.b32.xlu0 %v177, 127
        %v199 = vpop.permute.xlu0 %198
        %200 = vrot.lane.b32.xlu0 %v176, 127
        %v201 = vpop.permute.xlu0 %200
        %v205 = vsub.f32 %v193, %v197
        %v206 = vsub.f32 %v194, %v199
        %v207 = vsub.f32 %v195, %v201
        %209 = vrot.lane.b32.xlu0 %v166, 1
        %v210 = vpop.permute.xlu0 %209
        %211 = vrot.lane.b32.xlu0 %v167, 1
        %v212 = vpop.permute.xlu0 %211
        %213 = vrot.lane.b32.xlu0 %v168, 1
        %v214 = vpop.permute.xlu0 %213
        %v218 = vsub.f32 %v205, %v210
        %v219 = vsub.f32 %v206, %v212
        %v220 = vsub.f32 %v207, %v214
        %221 = vrot.lane.b32.xlu0 %v166, 127
        %v222 = vpop.permute.xlu0 %221
        %223 = vrot.lane.b32.xlu0 %v167, 127
        %v224 = vpop.permute.xlu0 %223
        %225 = vrot.lane.b32.xlu0 %v168, 127
        %v226 = vpop.permute.xlu0 %225
        %v230 = vsub.f32 %v218, %v222
        %v231 = vsub.f32 %v219, %v224
        %v232 = vsub.f32 %v220, %v226
        %vm233 = vcmask 1046528
        %v234 = vrot.slane %v166, 1
        %v235 = vrot.slane %v167, 1
        %v236 = vsel %vm233, %v234, %v235
        %v237 = vrot.slane %v168, 1
        %v238 = vsel %vm233, %v235, %v237
        %239 = vrot.lane.b32.xlu0 %v236, 1
        %v240 = vpop.permute.xlu0 %239
        %241 = vrot.lane.b32.xlu0 %v238, 1
        %v242 = vpop.permute.xlu0 %241
        %243 = vrot.lane.b32.xlu0 %v237, 1
        %v244 = vpop.permute.xlu0 %243
        %v248 = vsub.f32 %v230, %v240
        %v249 = vsub.f32 %v231, %v242
        %v250 = vsub.f32 %v232, %v244
        %v254 = vsub.f32 %v248, %v236
        %v255 = vsub.f32 %v249, %v238
        %v256 = vsub.f32 %v250, %v237
        %257 = vrot.lane.b32.xlu0 %v236, 127
        %v258 = vpop.permute.xlu0 %257
        %259 = vrot.lane.b32.xlu0 %v238, 127
        %v260 = vpop.permute.xlu0 %259
        %261 = vrot.lane.b32.xlu0 %v237, 127
        %v262 = vpop.permute.xlu0 %261
        %v266 = vsub.f32 %v254, %v258
        %v267 = vsub.f32 %v255, %v260
        %v268 = vsub.f32 %v256, %v262
        %272 = vrot.lane.b32.xlu0 %v266, 127
        %v273 = vpop.permute.xlu0 %272
        %274 = vrot.lane.b32.xlu0 %v267, 127
        %v275 = vpop.permute.xlu0 %274
        %276 = vrot.lane.b32.xlu0 %v268, 127
        %v277 = vpop.permute.xlu0 %276
        %vm281 = vcmask 130049
        %282 = vst.msk [vmem:[%s142 - $0x1] sm:$0xfe] %vm281, %v273
        %vm283 = vcmask 130048
        %284 = vst.msk [vmem:[%s142 + $0x7] sm:$0xff] %vm283, %v275
        %vm285 = vcmask 122880
        %286 = vst.msk [vmem:[%s142 + $0xf] sm:$0x1] %vm285, %v277
        %vm287 = vcmask 138249
        %v288 = vsel %vm287, %v266, inf
        %vm289 = vcmask 138248
        %v290 = vsel %vm289, %v267, inf
        %vm291 = vcmask 131080
        %v292 = vsel %vm291, %v268, inf
        %v293 = vmin.f32 %v288, %v290
        %v294 = vmin.f32 %v293, %v292
        %295 = vmin.xlane.f32.xlu0 %v294
        %v296 = vpop.xlane.xlu0 %295
        %v297 = vrot.slane %v296, 4
        %v298 = vmin.f32 %v296, %v297
        %v299 = vrot.slane %v298, 2
        %v300 = vmin.f32 %v298, %v299
        %v301 = vrot.slane %v300, 1
        %v302 = vmin.f32 %v300, %v301
        %s303 = vtos %v302
        %v304 = vsel %vm287, %v266, -inf
        %v305 = vsel %vm289, %v267, -inf
        %v306 = vsel %vm291, %v268, -inf
        %v307 = vmax.f32 %v304, %v305
        %v308 = vmax.f32 %v307, %v306
        %309 = vmax.xlane.f32.xlu0 %v308
        %v310 = vpop.xlane.xlu0 %309
        %v311 = vrot.slane %v310, 4
        %v312 = vmax.f32 %v310, %v311
        %v313 = vrot.slane %v312, 2
        %v314 = vmax.f32 %v312, %v313
        %v315 = vrot.slane %v314, 1
        %v316 = vmax.f32 %v314, %v315
        %s317 = vtos %v316
        %p318 = scmp.eq.s32.totalorder %s15, 0
        // Predicated region
        $region25: #{edge_detector.2} parent=23 // pred_check
          %p319 = pneg %p318
        $region26: #{edge_detector.2} parent=23 // pred_check_branch
          %321 = sbr.rel (%p319) target = $region28
        $region27: #{edge_detector.2} parent=23 // pred_region
          %s322 = scalar_lea.smem [#allocation2], 0
          %323 = sst [smem:[%s322]] %s303
          %s324 = scalar_lea.smem [#allocation2], 1
          %325 = sst [smem:[%s324]] %s317
        $region28: #{edge_detector.2} parent=23 // pred_fallthru
          _
        %p326 = scmp.gt.s32.totalorder %s15, 0
        // Predicated region
        $region29: #{edge_detector.2} parent=23 // pred_check
          %p327 = pneg %p326
        $region30: #{edge_detector.2} parent=23 // pred_check_branch
          %329 = sbr.rel (%p327) target = $region32
        $region31: #{edge_detector.2} parent=23 // pred_region
          %s330 = sld [smem:[#allocation2]]
          %s331 = smin.f32 %s330, %s303
          %s332 = scalar_lea.smem [#allocation2], 0
          %333 = sst [smem:[%s332]] %s331
          %s334 = sld [smem:[#allocation2 + $0x1]]
          %s335 = smax.f32 %s334, %s317
          %s336 = scalar_lea.smem [#allocation2], 1
          %337 = sst [smem:[%s336]] %s335
        $region32: #{edge_detector.2} parent=23 // pred_fallthru
          _
        %p338 = scmp.lt.s32.totalorder %s15, 1
        %s339 = scalar_select %p338, %s15, 1
        %s340 = smul.addr %s339, 2
        %s341 = smul.addr %s340, 8
        %s342 = scalar_lea.vmem %s1, %s341
        // Predicated region
        $region33: #{edge_detector.2} parent=23 // pred_check
          %p343 = pneg %p59
        $region34: #{edge_detector.2} parent=23 // pred_check_branch
          %345 = sbr.rel (%p343) target = $region36
        $region35: #{edge_detector.2} parent=23 // pred_region
          _
        $region36: #{edge_detector.2} parent=23 // pred_fallthru
          _
        // Predicated region
        $region37: #{edge_detector.2} parent=23 // pred_check
          %p346 = pneg %p80
        $region38: #{edge_detector.2} parent=23 // pred_check_branch
          %348 = sbr.rel (%p346) target = $region40
        $region39: #{edge_detector.2} parent=23 // pred_region
          %s350 = ssub.s32 16, 16
          %351 = vsyncadd [#allocation3], %s350
          %s353 = sshll.u32 %s2, 4
          %s354 = int_to_ptr.vmem [resolvable:$true] %s353
          %356 = dma.smem_to_vmem [#allocation2], 16, %s354, [#allocation3]
        $region40: #{edge_detector.2} parent=23 // pred_fallthru
          _
        // Predicated region
        $region41: #{edge_detector.2} parent=23 // pred_check
          %p357 = pneg %p80
        $region42: #{edge_detector.2} parent=23 // pred_check_branch
          %359 = sbr.rel (%p357) target = $region44
        $region43: #{edge_detector.2} parent=23 // pred_region
          %360 = dma.done [#allocation3], 16
        $region44: #{edge_detector.2} parent=23 // pred_fallthru
          _
        %361 = sfence
      $region24: #{edge_detector.2} parent=5 // pred_fallthru
        _
      %p362 = scmp.le.s32.totalorder 2, %s10
      // Predicated region
      $region45: #{edge_detector.2} parent=5 // pred_check
        %p363 = pneg %p362
      $region46: #{edge_detector.2} parent=5 // pred_check_branch
        %365 = sbr.rel (%p363) target = $region48
      $region47: #{edge_detector.2} parent=5 // pred_region
        %s366 = ssub.s32 %s10, 2
        // Predicated region
        $region49: #{edge_detector.2} parent=47 // pred_check
          %p367 = pneg %p65
        $region50: #{edge_detector.2} parent=47 // pred_check_branch
          %369 = sbr.rel (%p367) target = $region52
        $region51: #{edge_detector.2} parent=47 // pred_region
          %p370 = scmp.lt.s32.totalorder %s16, 1
          %s371 = scalar_select %p370, %s16, 1
          %s372 = smul.addr %s371, 2
          %s373 = smul.addr %s372, 8
          %s374 = scalar_lea.vmem %s1, %s373
        $region52: #{edge_detector.2} parent=47 // pred_fallthru
          _
      $region48: #{edge_detector.2} parent=5 // pred_fallthru
        _
    $region6: #{edge_detector.2} parent=1 // loop_footer
      %s14 = sadd.s32 1, %s10
    $region7: #{edge_detector.2} parent=1 // loop_footer_branch
      %9 = sbr.rel target = $region3
    $region8: #{edge_detector.2} parent=1 // loop_exit
      _
    %375 = vsyncpa [#allocation3], 1
    %s376 = scalar_lea.sflag [#allocation3], 1
    %377 = vsyncpa %s376, 1

</llo_original>
